<compile_context>
chip_gen: v5e
topology: v5e:2x2
jax: 0.10.0
libtpu: 0.0.40
codegen_flags: <defaults>
</compile_context>

<pallas_src>
import jax
import jax.numpy as jnp
from jax.experimental import pallas as pl
from jax.experimental.pallas import tpu as pltpu


_VMEM_LIMIT_BYTES = 48 * 1024 * 1024    # explicit scoped-VMEM limit (< v7x's 64 MiB)
_VMEM_BLOCK_BUDGET = 36 * 1024 * 1024   # target footprint of double-buffered blocks


def _attention_kernel(o_ref, c_ref, w_mix_ref, w_out_ref, b_ref, y_ref, attn_ref):
    # Blocks: o_ref (TB, D), c_ref (TB, N, D), w_* (D, D), b_ref (1, D),
    #         y_ref (TB, D), attn_ref (TB, N).
    n_ctx = c_ref.shape[1]

    o = o_ref[...]                                  # (TB, D), native dtype
    o32 = o.astype(jnp.float32)

    # scores[b, n] = sum_d o[b, d] * c[b, n, d]
    # N is small and static: per-n VPU multiply + lane-axis reduce over a
    # sublane-strided read of the context tile.  A batched dot here would be
    # TB degenerate M=1 MXU pushes; the VPU/XLU slots are far cheaper and the
    # MXU is kept free for the final Linear.
    cols = []
    for n in range(n_ctx):
        c_n = c_ref[:, n, :].astype(jnp.float32)                    # (TB, D)
        cols.append(jnp.sum(o32 * c_n, axis=-1, keepdims=True))     # (TB, 1)
    scores = jnp.concatenate(cols, axis=-1)                         # (TB, N), f32

    # Softmax over N.  Exact normalization: attn is returned to the caller as
    # probabilities, so no approximate reciprocal on this path.
    m = jnp.max(scores, axis=-1, keepdims=True)
    e = jnp.exp(scores - m)
    attn = e / jnp.sum(e, axis=-1, keepdims=True)                   # (TB, N), f32

    # mix[b, d] = sum_n attn[b, n] * c[b, n, d]: second streaming pass over the
    # VMEM-resident context tile (cheaper than keeping (TB, N, D) live across
    # the softmax), per-n lane-broadcast multiply-accumulate on the VPU.
    mix = jnp.zeros_like(o32)
    for n in range(n_ctx):
        c_n = c_ref[:, n, :].astype(jnp.float32)
        mix = mix + attn[:, n:n + 1] * c_n                          # (TB, D), f32

    # Linear(2D -> D) without the lane-axis concat:
    #   cat(mix, o) @ W == mix @ W[:D] + o @ W[D:]
    # (TB, D) @ (D, D): the batch tile fills the MXU M dimension.
    y = jnp.tanh(
        jnp.dot(mix.astype(w_mix_ref.dtype), w_mix_ref[...],
                preferred_element_type=jnp.float32)
        + jnp.dot(o, w_out_ref[...], preferred_element_type=jnp.float32)
        + b_ref[...].astype(jnp.float32))

    y_ref[...] = y.astype(y_ref.dtype)
    attn_ref[...] = attn.astype(attn_ref.dtype)


def _block_vmem_bytes(tb, n_ctx, d, itemsize=4):
    """Rough VMEM footprint of the double-buffered per-step blocks."""
    lane = lambda v: pl.cdiv(v, 128) * 128
    sub = lambda v: pl.cdiv(v, 8) * 8
    per_row = itemsize * (lane(d)                 # decoder-output row
                          + sub(n_ctx) * lane(d)  # context rows
                          + lane(d)               # y row
                          + lane(n_ctx))          # attn row
    return 2 * tb * per_row


def _pick_block_b(batch, n_ctx, d, budget_bytes=_VMEM_BLOCK_BUDGET):
    """Batch-tile heuristic: large tiles amortize per-step pipeline overhead and
    give the final Linear a 256-row MXU M (matches the v6e/v7x 256x256 MXU, a
    multiple of v5e's 128); keep >= 2 grid steps when the batch allows it
    (v7x megacore) and stay inside the VMEM budget (v7x: 64 MiB physical)."""
    if batch <= 8:
        tb = batch                       # block == full dim, no padding games
    elif batch <= 256:
        tb = pl.cdiv(batch, 8) * 8       # one sublane-aligned tile
    elif batch < 2048:
        tb = 256
    else:
        tb = 512
    while tb > 8 and _block_vmem_bytes(tb, n_ctx, d) > budget_bytes:
        tb = max(8, tb // 2)
    return tb


def _attention_single_step(out2d, context, w_mix, w_out, b2d, *, block_b=None):
    batch, d = out2d.shape
    _, n_ctx, _ = context.shape
    tb = block_b if block_b is not None else _pick_block_b(batch, n_ctx, d)
    # No jnp.pad of the inputs: the ragged tail block (if any) relies on
    # Pallas' masked writeback / don't-care reads.
    grid = (pl.cdiv(batch, tb),)

    grid_spec = pltpu.PrefetchScalarGridSpec(
        num_scalar_prefetch=0,
        grid=grid,
        in_specs=[
            pl.BlockSpec((tb, d), lambda i: (i, 0)),
            pl.BlockSpec((tb, n_ctx, d), lambda i: (i, 0, 0)),
            # Constant index maps: fetched from HBM once, VMEM-resident after.
            pl.BlockSpec((d, d), lambda i: (0, 0)),
            pl.BlockSpec((d, d), lambda i: (0, 0)),
            pl.BlockSpec((1, d), lambda i: (0, 0)),
        ],
        out_specs=[
            pl.BlockSpec((tb, d), lambda i: (i, 0)),
            pl.BlockSpec((tb, n_ctx), lambda i: (i, 0)),
        ],
    )
    y, attn = pl.pallas_call(
        _attention_kernel,
        out_shape=(
            jax.ShapeDtypeStruct((batch, d), out2d.dtype),
            jax.ShapeDtypeStruct((batch, n_ctx), out2d.dtype),
        ),
        grid_spec=grid_spec,
        compiler_params=pltpu.CompilerParams(
            dimension_semantics=("parallel",),
            vmem_limit_bytes=_VMEM_LIMIT_BYTES,
        ),
    )(out2d, context, w_mix, w_out, b2d)
    return y, attn


def attention_forward(output, context, w, b, *, block_b=None):
    """Forward pass of `Attention` (mask=None).

    output : (B, L, D) decoder states (module contract: L == 1)
    context: (B, N, D) encoder states
    w      : (2D, D) pre-transposed Linear(2D->D) weight; rows [0:D] multiply
             `mix`, rows [D:2D] multiply `output` (i.e. torch weight.T)
    b      : (D,) Linear bias
    Returns (y (B, L, D), attn (B, L, N)).
    """
    bsz, dec_len, d = output.shape
    bsz_c, n_ctx, d_c = context.shape
    assert bsz_c == bsz and d_c == d and w.shape == (2 * d, d) and b.shape == (d,)

    w_mix, w_out = w[:d], w[d:]
    b2d = b.reshape(1, d)

    # TODO(synk): set_mask (masked_fill(-inf) before softmax) is not wired in.
    ys, attns = [], []
    for l in range(dec_len):  # module contract is L == 1; loop keeps L > 1 correct
        y2, a2 = _attention_single_step(output[:, l, :], context, w_mix, w_out,
                                        b2d, block_b=block_b)
        ys.append(y2)
        attns.append(a2)
    return jnp.stack(ys, axis=1), jnp.stack(attns, axis=1)


def attention_reference(output, context, w, b):
    """Pure-JAX reference mirroring the PyTorch forward (f32-accurate)."""
    hi = jax.lax.Precision.HIGHEST
    scores = jnp.einsum("bld,bnd->bln", output, context, precision=hi)
    attn = jax.nn.softmax(scores, axis=-1)
    mix = jnp.einsum("bln,bnd->bld", attn, context, precision=hi)
    combined = jnp.concatenate([mix, output], axis=-1)
    y = jnp.tanh(jnp.dot(combined, w, precision=hi) + b)
    return y, attn


if __name__ == "__main__":
    key = jax.random.PRNGKey(0)
    kw, kb, k1, k2, k3, k4 = jax.random.split(key, 6)

    D, N, L = 32, 8, 1

    # nn.Linear(2D, D): weight (D, 2D), bias (D), uniform(+-1/sqrt(2D)).
    bound = 1.0 / (2.0 * D) ** 0.5
    w_torch = jax.random.uniform(kw, (D, 2 * D), minval=-bound, maxval=bound,
                                 dtype=jnp.float32)
    b_lin = jax.random.uniform(kb, (D,), minval=-bound, maxval=bound,
                               dtype=jnp.float32)
    w = w_torch.T  # (2D, D), pre-transposed for the kernel

    def run_and_check(batch, k_out, k_ctx):
        output = jax.random.normal(k_out, (batch, L, D), dtype=jnp.float32)
        context = jax.random.normal(k_ctx, (batch, N, D), dtype=jnp.float32)
        y, attn = attention_forward(output, context, w, b_lin)
        jax.block_until_ready((y, attn))
        y_ref, attn_ref = attention_reference(output, context, w, b_lin)
        assert y.shape == (batch, L, D) and attn.shape == (batch, L, N)
        # attn uses exact normalization -> tight; y goes through the MXU Linear.
        assert jnp.allclose(attn, attn_ref, atol=1e-4, rtol=1e-4), "attn mismatch"
        assert jnp.allclose(y, y_ref, atol=2e-3, rtol=2e-3), "y mismatch"

    # Module-spec small shapes: single full-size block.
    run_and_check(2, k1, k2)
    # Multi-step grid with a ragged tail (2 x 256-row tiles over B=500):
    # exercises the no-pad masked-tail path and the 256-row MXU M Linear.
    run_and_check(500, k3, k4)

    print("KERNEL_OK")
</pallas_src>

<mosaic_0001>
module attributes {stable_mosaic.version = 11 : i64} {
  func.func @_attention_kernel(%arg0: i32, %arg1: memref<2x32xf32, #tpu.memory_space<vmem>>, %arg2: memref<2x8x32xf32, #tpu.memory_space<vmem>>, %arg3: memref<32x32xf32, #tpu.memory_space<vmem>>, %arg4: memref<32x32xf32, #tpu.memory_space<vmem>>, %arg5: memref<1x32xf32, #tpu.memory_space<vmem>>, %arg6: memref<2x32xf32, #tpu.memory_space<vmem>>, %arg7: memref<2x8xf32, #tpu.memory_space<vmem>>) attributes {dimension_semantics = [#tpu.dimension_semantics<parallel>], iteration_bounds = array<i64: 1>, scalar_prefetch = 0 : i64, scratch_operands = 0 : i64, tpu.core_type = #tpu.core_type<tc>, window_params = [{transform_indices = @transform_0, window_bounds = array<i64: 2, 32>}, {transform_indices = @transform_1, window_bounds = array<i64: 2, 8, 32>}, {pipeline_mode = #tpu.pipeline_mode<synchronous>, transform_indices = @transform_2, window_bounds = array<i64: 32, 32>}, {pipeline_mode = #tpu.pipeline_mode<synchronous>, transform_indices = @transform_3, window_bounds = array<i64: 32, 32>}, {pipeline_mode = #tpu.pipeline_mode<synchronous>, transform_indices = @transform_4, window_bounds = array<i64: 1, 32>}, {transform_indices = @transform_5, window_bounds = array<i64: 2, 32>}, {transform_indices = @transform_6, window_bounds = array<i64: 2, 8>}]} {
    %c0 = arith.constant 0 : index
    %c0_0 = arith.constant 0 : index
    %0 = vector.load %arg1[%c0, %c0_0] : memref<2x32xf32, #tpu.memory_space<vmem>>, vector<2x32xf32>
    %c0_1 = arith.constant 0 : index
    %c0_2 = arith.constant 0 : index
    %c0_3 = arith.constant 0 : index
    %1 = vector.load %arg2[%c0_1, %c0_2, %c0_3] : memref<2x8x32xf32, #tpu.memory_space<vmem>>, vector<2x1x32xf32>
    %2 = vector.shape_cast %1 : vector<2x1x32xf32> to vector<2x32xf32>
    %3 = arith.mulf %0, %2 : vector<2x32xf32>
    %cst = arith.constant dense<0.000000e+00> : vector<2xf32>
    %4 = vector.multi_reduction <add>, %3, %cst [1] : vector<2x32xf32> to vector<2xf32>
    %5 = vector.shape_cast %4 : vector<2xf32> to vector<2x1xf32>
    %c0_4 = arith.constant 0 : index
    %c1 = arith.constant 1 : index
    %c0_5 = arith.constant 0 : index
    %6 = vector.load %arg2[%c0_4, %c1, %c0_5] : memref<2x8x32xf32, #tpu.memory_space<vmem>>, vector<2x1x32xf32>
    %7 = vector.shape_cast %6 : vector<2x1x32xf32> to vector<2x32xf32>
    %8 = arith.mulf %0, %7 : vector<2x32xf32>
    %cst_6 = arith.constant dense<0.000000e+00> : vector<2xf32>
    %9 = vector.multi_reduction <add>, %8, %cst_6 [1] : vector<2x32xf32> to vector<2xf32>
    %10 = vector.shape_cast %9 : vector<2xf32> to vector<2x1xf32>
    %c0_7 = arith.constant 0 : index
    %c2 = arith.constant 2 : index
    %c0_8 = arith.constant 0 : index
    %11 = vector.load %arg2[%c0_7, %c2, %c0_8] : memref<2x8x32xf32, #tpu.memory_space<vmem>>, vector<2x1x32xf32>
    %12 = vector.shape_cast %11 : vector<2x1x32xf32> to vector<2x32xf32>
    %13 = arith.mulf %0, %12 : vector<2x32xf32>
    %cst_9 = arith.constant dense<0.000000e+00> : vector<2xf32>
    %14 = vector.multi_reduction <add>, %13, %cst_9 [1] : vector<2x32xf32> to vector<2xf32>
    %15 = vector.shape_cast %14 : vector<2xf32> to vector<2x1xf32>
    %c0_10 = arith.constant 0 : index
    %c3 = arith.constant 3 : index
    %c0_11 = arith.constant 0 : index
    %16 = vector.load %arg2[%c0_10, %c3, %c0_11] : memref<2x8x32xf32, #tpu.memory_space<vmem>>, vector<2x1x32xf32>
    %17 = vector.shape_cast %16 : vector<2x1x32xf32> to vector<2x32xf32>
    %18 = arith.mulf %0, %17 : vector<2x32xf32>
    %cst_12 = arith.constant dense<0.000000e+00> : vector<2xf32>
    %19 = vector.multi_reduction <add>, %18, %cst_12 [1] : vector<2x32xf32> to vector<2xf32>
    %20 = vector.shape_cast %19 : vector<2xf32> to vector<2x1xf32>
    %c0_13 = arith.constant 0 : index
    %c4 = arith.constant 4 : index
    %c0_14 = arith.constant 0 : index
    %21 = vector.load %arg2[%c0_13, %c4, %c0_14] : memref<2x8x32xf32, #tpu.memory_space<vmem>>, vector<2x1x32xf32>
    %22 = vector.shape_cast %21 : vector<2x1x32xf32> to vector<2x32xf32>
    %23 = arith.mulf %0, %22 : vector<2x32xf32>
    %cst_15 = arith.constant dense<0.000000e+00> : vector<2xf32>
    %24 = vector.multi_reduction <add>, %23, %cst_15 [1] : vector<2x32xf32> to vector<2xf32>
    %25 = vector.shape_cast %24 : vector<2xf32> to vector<2x1xf32>
    %c0_16 = arith.constant 0 : index
    %c5 = arith.constant 5 : index
    %c0_17 = arith.constant 0 : index
    %26 = vector.load %arg2[%c0_16, %c5, %c0_17] : memref<2x8x32xf32, #tpu.memory_space<vmem>>, vector<2x1x32xf32>
    %27 = vector.shape_cast %26 : vector<2x1x32xf32> to vector<2x32xf32>
    %28 = arith.mulf %0, %27 : vector<2x32xf32>
    %cst_18 = arith.constant dense<0.000000e+00> : vector<2xf32>
    %29 = vector.multi_reduction <add>, %28, %cst_18 [1] : vector<2x32xf32> to vector<2xf32>
    %30 = vector.shape_cast %29 : vector<2xf32> to vector<2x1xf32>
    %c0_19 = arith.constant 0 : index
    %c6 = arith.constant 6 : index
    %c0_20 = arith.constant 0 : index
    %31 = vector.load %arg2[%c0_19, %c6, %c0_20] : memref<2x8x32xf32, #tpu.memory_space<vmem>>, vector<2x1x32xf32>
    %32 = vector.shape_cast %31 : vector<2x1x32xf32> to vector<2x32xf32>
    %33 = arith.mulf %0, %32 : vector<2x32xf32>
    %cst_21 = arith.constant dense<0.000000e+00> : vector<2xf32>
    %34 = vector.multi_reduction <add>, %33, %cst_21 [1] : vector<2x32xf32> to vector<2xf32>
    %35 = vector.shape_cast %34 : vector<2xf32> to vector<2x1xf32>
    %c0_22 = arith.constant 0 : index
    %c7 = arith.constant 7 : index
    %c0_23 = arith.constant 0 : index
    %36 = vector.load %arg2[%c0_22, %c7, %c0_23] : memref<2x8x32xf32, #tpu.memory_space<vmem>>, vector<2x1x32xf32>
    %37 = vector.shape_cast %36 : vector<2x1x32xf32> to vector<2x32xf32>
    %38 = arith.mulf %0, %37 : vector<2x32xf32>
    %cst_24 = arith.constant dense<0.000000e+00> : vector<2xf32>
    %39 = vector.multi_reduction <add>, %38, %cst_24 [1] : vector<2x32xf32> to vector<2xf32>
    %40 = vector.shape_cast %39 : vector<2xf32> to vector<2x1xf32>
    %41 = tpu.concatenate %5, %10, %15, %20, %25, %30, %35, %40 in 1 : vector<2x1xf32>, vector<2x1xf32>, vector<2x1xf32>, vector<2x1xf32>, vector<2x1xf32>, vector<2x1xf32>, vector<2x1xf32>, vector<2x1xf32> -> vector<2x8xf32>
    %cst_25 = arith.constant dense<0xFF800000> : vector<2xf32>
    %42 = vector.multi_reduction <maximumf>, %41, %cst_25 [1] : vector<2x8xf32> to vector<2xf32>
    %43 = vector.shape_cast %42 : vector<2xf32> to vector<2x1xf32>
    %44 = vector.broadcast %43 : vector<2x1xf32> to vector<2x8xf32>
    %45 = arith.subf %41, %44 : vector<2x8xf32>
    %46 = math.exp %45 : vector<2x8xf32>
    %cst_26 = arith.constant dense<0.000000e+00> : vector<2xf32>
    %47 = vector.multi_reduction <add>, %46, %cst_26 [1] : vector<2x8xf32> to vector<2xf32>
    %48 = vector.shape_cast %47 : vector<2xf32> to vector<2x1xf32>
    %49 = vector.broadcast %48 : vector<2x1xf32> to vector<2x8xf32>
    %50 = arith.divf %46, %49 : vector<2x8xf32>
    %cst_27 = arith.constant 0.000000e+00 : f32
    %51 = vector.broadcast %cst_27 : f32 to vector<2x32xf32>
    %c0_28 = arith.constant 0 : index
    %c0_29 = arith.constant 0 : index
    %c0_30 = arith.constant 0 : index
    %52 = vector.load %arg2[%c0_28, %c0_29, %c0_30] : memref<2x8x32xf32, #tpu.memory_space<vmem>>, vector<2x1x32xf32>
    %53 = vector.shape_cast %52 : vector<2x1x32xf32> to vector<2x32xf32>
    %54 = vector.extract_strided_slice %50 {offsets = [0, 0], sizes = [2, 1], strides = [1, 1]} : vector<2x8xf32> to vector<2x1xf32>
    %55 = vector.broadcast %54 : vector<2x1xf32> to vector<2x32xf32>
    %56 = arith.mulf %55, %53 : vector<2x32xf32>
    %57 = arith.addf %51, %56 : vector<2x32xf32>
    %c0_31 = arith.constant 0 : index
    %c1_32 = arith.constant 1 : index
    %c0_33 = arith.constant 0 : index
    %58 = vector.load %arg2[%c0_31, %c1_32, %c0_33] : memref<2x8x32xf32, #tpu.memory_space<vmem>>, vector<2x1x32xf32>
    %59 = vector.shape_cast %58 : vector<2x1x32xf32> to vector<2x32xf32>
    %60 = vector.extract_strided_slice %50 {offsets = [0, 1], sizes = [2, 1], strides = [1, 1]} : vector<2x8xf32> to vector<2x1xf32>
    %61 = vector.broadcast %60 : vector<2x1xf32> to vector<2x32xf32>
    %62 = arith.mulf %61, %59 : vector<2x32xf32>
    %63 = arith.addf %57, %62 : vector<2x32xf32>
    %c0_34 = arith.constant 0 : index
    %c2_35 = arith.constant 2 : index
    %c0_36 = arith.constant 0 : index
    %64 = vector.load %arg2[%c0_34, %c2_35, %c0_36] : memref<2x8x32xf32, #tpu.memory_space<vmem>>, vector<2x1x32xf32>
    %65 = vector.shape_cast %64 : vector<2x1x32xf32> to vector<2x32xf32>
    %66 = vector.extract_strided_slice %50 {offsets = [0, 2], sizes = [2, 1], strides = [1, 1]} : vector<2x8xf32> to vector<2x1xf32>
    %67 = vector.broadcast %66 : vector<2x1xf32> to vector<2x32xf32>
    %68 = arith.mulf %67, %65 : vector<2x32xf32>
    %69 = arith.addf %63, %68 : vector<2x32xf32>
    %c0_37 = arith.constant 0 : index
    %c3_38 = arith.constant 3 : index
    %c0_39 = arith.constant 0 : index
    %70 = vector.load %arg2[%c0_37, %c3_38, %c0_39] : memref<2x8x32xf32, #tpu.memory_space<vmem>>, vector<2x1x32xf32>
    %71 = vector.shape_cast %70 : vector<2x1x32xf32> to vector<2x32xf32>
    %72 = vector.extract_strided_slice %50 {offsets = [0, 3], sizes = [2, 1], strides = [1, 1]} : vector<2x8xf32> to vector<2x1xf32>
    %73 = vector.broadcast %72 : vector<2x1xf32> to vector<2x32xf32>
    %74 = arith.mulf %73, %71 : vector<2x32xf32>
    %75 = arith.addf %69, %74 : vector<2x32xf32>
    %c0_40 = arith.constant 0 : index
    %c4_41 = arith.constant 4 : index
    %c0_42 = arith.constant 0 : index
    %76 = vector.load %arg2[%c0_40, %c4_41, %c0_42] : memref<2x8x32xf32, #tpu.memory_space<vmem>>, vector<2x1x32xf32>
    %77 = vector.shape_cast %76 : vector<2x1x32xf32> to vector<2x32xf32>
    %78 = vector.extract_strided_slice %50 {offsets = [0, 4], sizes = [2, 1], strides = [1, 1]} : vector<2x8xf32> to vector<2x1xf32>
    %79 = vector.broadcast %78 : vector<2x1xf32> to vector<2x32xf32>
    %80 = arith.mulf %79, %77 : vector<2x32xf32>
    %81 = arith.addf %75, %80 : vector<2x32xf32>
    %c0_43 = arith.constant 0 : index
    %c5_44 = arith.constant 5 : index
    %c0_45 = arith.constant 0 : index
    %82 = vector.load %arg2[%c0_43, %c5_44, %c0_45] : memref<2x8x32xf32, #tpu.memory_space<vmem>>, vector<2x1x32xf32>
    %83 = vector.shape_cast %82 : vector<2x1x32xf32> to vector<2x32xf32>
    %84 = vector.extract_strided_slice %50 {offsets = [0, 5], sizes = [2, 1], strides = [1, 1]} : vector<2x8xf32> to vector<2x1xf32>
    %85 = vector.broadcast %84 : vector<2x1xf32> to vector<2x32xf32>
    %86 = arith.mulf %85, %83 : vector<2x32xf32>
    %87 = arith.addf %81, %86 : vector<2x32xf32>
    %c0_46 = arith.constant 0 : index
    %c6_47 = arith.constant 6 : index
    %c0_48 = arith.constant 0 : index
    %88 = vector.load %arg2[%c0_46, %c6_47, %c0_48] : memref<2x8x32xf32, #tpu.memory_space<vmem>>, vector<2x1x32xf32>
    %89 = vector.shape_cast %88 : vector<2x1x32xf32> to vector<2x32xf32>
    %90 = vector.extract_strided_slice %50 {offsets = [0, 6], sizes = [2, 1], strides = [1, 1]} : vector<2x8xf32> to vector<2x1xf32>
    %91 = vector.broadcast %90 : vector<2x1xf32> to vector<2x32xf32>
    %92 = arith.mulf %91, %89 : vector<2x32xf32>
    %93 = arith.addf %87, %92 : vector<2x32xf32>
    %c0_49 = arith.constant 0 : index
    %c7_50 = arith.constant 7 : index
    %c0_51 = arith.constant 0 : index
    %94 = vector.load %arg2[%c0_49, %c7_50, %c0_51] : memref<2x8x32xf32, #tpu.memory_space<vmem>>, vector<2x1x32xf32>
    %95 = vector.shape_cast %94 : vector<2x1x32xf32> to vector<2x32xf32>
    %96 = vector.extract_strided_slice %50 {offsets = [0, 7], sizes = [2, 1], strides = [1, 1]} : vector<2x8xf32> to vector<2x1xf32>
    %97 = vector.broadcast %96 : vector<2x1xf32> to vector<2x32xf32>
    %98 = arith.mulf %97, %95 : vector<2x32xf32>
    %99 = arith.addf %93, %98 : vector<2x32xf32>
    %c0_52 = arith.constant 0 : index
    %c0_53 = arith.constant 0 : index
    %100 = vector.load %arg3[%c0_52, %c0_53] : memref<32x32xf32, #tpu.memory_space<vmem>>, vector<32x32xf32>
    %cst_54 = arith.constant dense<0.000000e+00> : vector<2x32xf32>
    %101 = tpu.matmul %99, %100, %cst_54 {dimension_numbers = #tpu.dot_dimension_numbers<[1], [0], [0], [1], [0, 0, 1, 1], [], []>} : vector<2x32xf32>, vector<32x32xf32>, vector<2x32xf32> -> vector<2x32xf32>
    %c0_55 = arith.constant 0 : index
    %c0_56 = arith.constant 0 : index
    %102 = vector.load %arg4[%c0_55, %c0_56] : memref<32x32xf32, #tpu.memory_space<vmem>>, vector<32x32xf32>
    %cst_57 = arith.constant dense<0.000000e+00> : vector<2x32xf32>
    %103 = tpu.matmul %0, %102, %cst_57 {dimension_numbers = #tpu.dot_dimension_numbers<[1], [0], [0], [1], [0, 0, 1, 1], [], []>} : vector<2x32xf32>, vector<32x32xf32>, vector<2x32xf32> -> vector<2x32xf32>
    %104 = arith.addf %101, %103 : vector<2x32xf32>
    %c0_58 = arith.constant 0 : index
    %c0_59 = arith.constant 0 : index
    %105 = vector.load %arg5[%c0_58, %c0_59] : memref<1x32xf32, #tpu.memory_space<vmem>>, vector<1x32xf32>
    %106 = vector.broadcast %105 : vector<1x32xf32> to vector<2x32xf32>
    %107 = arith.addf %104, %106 : vector<2x32xf32>
    %108 = math.tanh %107 : vector<2x32xf32>
    %c0_60 = arith.constant 0 : index
    %c0_61 = arith.constant 0 : index
    %109 = vector.load %arg6[%c0_60, %c0_61] : memref<2x32xf32, #tpu.memory_space<vmem>>, vector<2x32xf32>
    tpu.vector_store %arg6[%c0_60, %c0_61], %108 {strides = array<i32>} : memref<2x32xf32, #tpu.memory_space<vmem>>, vector<2x32xf32>,
    %c0_62 = arith.constant 0 : index
    %c0_63 = arith.constant 0 : index
    %110 = vector.load %arg7[%c0_62, %c0_63] : memref<2x8xf32, #tpu.memory_space<vmem>>, vector<2x8xf32>
    tpu.vector_store %arg7[%c0_62, %c0_63], %50 {strides = array<i32>} : memref<2x8xf32, #tpu.memory_space<vmem>>, vector<2x8xf32>,
    return
  }
  func.func @transform_0(%arg0: i32) -> (i32, i32) {
    %c0_i32 = arith.constant 0 : i32
    %c0_i32_0 = arith.constant 0 : i32
    return %arg0, %c0_i32 : i32, i32
  }
  func.func @transform_1(%arg0: i32) -> (i32, i32, i32) {
    %c0_i32 = arith.constant 0 : i32
    %c0_i32_0 = arith.constant 0 : i32
    %c0_i32_1 = arith.constant 0 : i32
    return %arg0, %c0_i32, %c0_i32_0 : i32, i32, i32
  }
  func.func @transform_2(%arg0: i32) -> (i32, i32) {
    %c0_i32 = arith.constant 0 : i32
    %c0_i32_0 = arith.constant 0 : i32
    %c0_i32_1 = arith.constant 0 : i32
    return %c0_i32, %c0_i32_0 : i32, i32
  }
  func.func @transform_3(%arg0: i32) -> (i32, i32) {
    %c0_i32 = arith.constant 0 : i32
    %c0_i32_0 = arith.constant 0 : i32
    %c0_i32_1 = arith.constant 0 : i32
    return %c0_i32, %c0_i32_0 : i32, i32
  }
  func.func @transform_4(%arg0: i32) -> (i32, i32) {
    %c0_i32 = arith.constant 0 : i32
    %c0_i32_0 = arith.constant 0 : i32
    %c0_i32_1 = arith.constant 0 : i32
    return %c0_i32, %c0_i32_0 : i32, i32
  }
  func.func @transform_5(%arg0: i32) -> (i32, i32) {
    %c0_i32 = arith.constant 0 : i32
    %c0_i32_0 = arith.constant 0 : i32
    return %arg0, %c0_i32 : i32, i32
  }
  func.func @transform_6(%arg0: i32) -> (i32, i32) {
    %c0_i32 = arith.constant 0 : i32
    %c0_i32_0 = arith.constant 0 : i32
    return %arg0, %c0_i32 : i32, i32
  }
}

</mosaic_0001>

<llo_original>
// kernel: tpu_custom_call.1
$region0: #{tpu_custom_call.1}
  #allocation0 [shape = 'u32[]', space=smem, size = 0x4, offset = 0x4, fixed_abs, tag = 'smem constant byte address 0x4 - core index']
  #allocation1 [shape = 'u32[72,128]{1,0:T(1,128)}', space=vmem, size = 0x9000, scoped, tag = 'internal scratch']
  %s0 = inlined_call_operand.hbm [shape: f32[2,32], index: 0, kind: input, shape index: {}]
  %s1 = inlined_call_operand.hbm [shape: f32[2,8,32], index: 1, kind: input, shape index: {}]
  %s2 = inlined_call_operand.hbm [shape: f32[32,32], index: 2, kind: input, shape index: {}]
  %s3 = inlined_call_operand.hbm [shape: f32[32,32], index: 3, kind: input, shape index: {}]
  %s4 = inlined_call_operand.vmem [shape: f32[1,32], index: 4, kind: input, shape index: {}]
  %s5 = inlined_call_operand.hbm [shape: f32[2,32], index: 5, kind: output, shape index: {0}]
  %s6 = inlined_call_operand.hbm [shape: f32[2,8], index: 6, kind: output, shape index: {1}]
  %7 = xla_tuple %s5, %s6
  %s8 = sld [smem:[#allocation0]]
  $region54: #{tpu_custom_call.1} parent=0
    _
  %s10 = ssub.s32 1, %s8
  %s11 = scalar_select 0, %s10, %s8
  $region1: #{tpu_custom_call.1} parent=0
    #allocation2 [shape = 'u8[1024]{0}', space=vmem, size = 0x400, scoped, tag = 'input window, operand 0, single buffered']
    #allocation3 [shape = 's32[1]{0}', space=sflag, size = 0x4, scoped, tag = 'scoped memory for tpu_custom_call.1']
    #allocation4 [shape = 's32[1]{0}', space=sflag, size = 0x4, scoped, tag = 'scoped memory for tpu_custom_call.1']
    #allocation5 [shape = 'u8[8192]{0}', space=vmem, size = 0x2000, scoped, tag = 'input window, operand 1, single buffered']
    #allocation6 [shape = 's32[1]{0}', space=sflag, size = 0x4, scoped, tag = 'scoped memory for tpu_custom_call.1']
    #allocation7 [shape = 'u8[16384]{0}', space=vmem, size = 0x4000, scoped, tag = 'input window, operand 2, single buffered']
    #allocation8 [shape = 'u8[16384]{0}', space=vmem, size = 0x4000, scoped, tag = 'input window, operand 3, single buffered']
    #allocation9 [shape = 's32[1]{0}', space=sflag, size = 0x4, scoped, tag = 'scoped memory for tpu_custom_call.1']
    #allocation10 [shape = 'u8[1024]{0}', space=vmem, size = 0x400, scoped, tag = 'output window, operand 0, single buffered']
    #allocation11 [shape = 'u8[1024]{0}', space=vmem, size = 0x400, scoped, tag = 'output window, operand 1, single buffered']
    #allocation12 [shape = 's32[1]{0}', space=sflag, size = 0x4, scoped, tag = 'scoped memory for tpu_custom_call.1']
    %12 = vsyncpa [#allocation3], 0
    %13 = vsyncpa [#allocation6], 0
    %14 = vsyncpa [#allocation9], 0
    %15 = vsyncpa [#allocation4], 0
    %16 = vsyncpa [#allocation12], 0
    // Predicated region
    $region2: #{tpu_custom_call.1} parent=1 // pred_check
      _
    $region3: #{tpu_custom_call.1} parent=1 // pred_check_branch
      %18 = sbr.rel (0) target = $region5
    $region4: #{tpu_custom_call.1} parent=1 // pred_region
      %20 = vsyncadd [#allocation3], 0
      %s22 = sshll.u32 %s0, 4
      %s23 = int_to_ptr.hbm [resolvable:$true] %s22
      %s24 = sshll.u32 [#allocation2], 4
      %s25 = int_to_ptr.vmem [resolvable:$true] %s24
      %27 = dma.hbm_to_vmem [thread:$0]  %s23, 32, %s25, [#allocation3]
    $region5: #{tpu_custom_call.1} parent=1 // pred_fallthru
      _
    // Predicated region
    $region6: #{tpu_custom_call.1} parent=1 // pred_check
      _
    $region7: #{tpu_custom_call.1} parent=1 // pred_check_branch
      %29 = sbr.rel (0) target = $region9
    $region8: #{tpu_custom_call.1} parent=1 // pred_region
      %31 = vsyncadd [#allocation6], 0
      %s32 = sshll.u32 %s1, 4
      %s33 = int_to_ptr.hbm [resolvable:$true] %s32
      %s34 = sshll.u32 [#allocation5], 4
      %s35 = int_to_ptr.vmem [resolvable:$true] %s34
      %40 = dma.hbm_to_vmem [thread:$0]  %s33, 256, %s35, [#allocation6], 128, 128, 8
    $region9: #{tpu_custom_call.1} parent=1 // pred_fallthru
      _
    // Predicated region
    $region10: #{tpu_custom_call.1} parent=1 // pred_check
      _
    $region11: #{tpu_custom_call.1} parent=1 // pred_check_branch
      %42 = sbr.rel (0) target = $region13
    $region12: #{tpu_custom_call.1} parent=1 // pred_region
      %44 = vsyncadd [#allocation6], 0
      %s45 = sshll.u32 %s2, 4
      %s46 = int_to_ptr.hbm [resolvable:$true] %s45
      %s47 = sshll.u32 [#allocation7], 4
      %s48 = int_to_ptr.vmem [resolvable:$true] %s47
      %53 = dma.hbm_to_vmem [thread:$0]  %s46, 512, %s48, [#allocation6], 128, 128, 8
    $region13: #{tpu_custom_call.1} parent=1 // pred_fallthru
      _
    // Predicated region
    $region14: #{tpu_custom_call.1} parent=1 // pred_check
      _
    $region15: #{tpu_custom_call.1} parent=1 // pred_check_branch
      %55 = sbr.rel (0) target = $region17
    $region16: #{tpu_custom_call.1} parent=1 // pred_region
      %57 = vsyncadd [#allocation9], 0
      %s58 = sshll.u32 %s3, 4
      %s59 = int_to_ptr.hbm [resolvable:$true] %s58
      %s60 = sshll.u32 [#allocation8], 4
      %s61 = int_to_ptr.vmem [resolvable:$true] %s60
      %66 = dma.hbm_to_vmem [thread:$0]  %s59, 512, %s61, [#allocation9], 128, 128, 8
    $region17: #{tpu_custom_call.1} parent=1 // pred_fallthru
      _
    // Predicated region
    $region18: #{tpu_custom_call.1} parent=1 // pred_check
      _
    $region19: #{tpu_custom_call.1} parent=1 // pred_check_branch
      %68 = sbr.rel (0) target = $region21
    $region20: #{tpu_custom_call.1} parent=1 // pred_region
      _
    $region21: #{tpu_custom_call.1} parent=1 // pred_fallthru
      _
    // Predicated region
    $region22: #{tpu_custom_call.1} parent=1 // pred_check
      _
    $region23: #{tpu_custom_call.1} parent=1 // pred_check_branch
      %70 = sbr.rel (0) target = $region25
    $region24: #{tpu_custom_call.1} parent=1 // pred_region
      %72 = dma.done [#allocation3], 32
    $region25: #{tpu_custom_call.1} parent=1 // pred_fallthru
      _
    // Predicated region
    $region26: #{tpu_custom_call.1} parent=1 // pred_check
      _
    $region27: #{tpu_custom_call.1} parent=1 // pred_check_branch
      %74 = sbr.rel (0) target = $region29
    $region28: #{tpu_custom_call.1} parent=1 // pred_region
      %76 = dma.done [#allocation6], 256
    $region29: #{tpu_custom_call.1} parent=1 // pred_fallthru
      _
    // Predicated region
    $region30: #{tpu_custom_call.1} parent=1 // pred_check
      _
    $region31: #{tpu_custom_call.1} parent=1 // pred_check_branch
      %78 = sbr.rel (0) target = $region33
    $region32: #{tpu_custom_call.1} parent=1 // pred_region
      %80 = dma.done [#allocation6], 512
    $region33: #{tpu_custom_call.1} parent=1 // pred_fallthru
      _
    // Predicated region
    $region34: #{tpu_custom_call.1} parent=1 // pred_check
      _
    $region35: #{tpu_custom_call.1} parent=1 // pred_check_branch
      %82 = sbr.rel (0) target = $region37
    $region36: #{tpu_custom_call.1} parent=1 // pred_region
      %84 = dma.done [#allocation9], 512
    $region37: #{tpu_custom_call.1} parent=1 // pred_fallthru
      _
    %v85 = vld [vmem:[#allocation2] sm:$0x3]
    %v86 = vld [vmem:[#allocation5] sm:$0x1]
    %v87 = vld [vmem:[#allocation5 + $0x8] sm:$0x1]
    %v90 = vrot.slane %v87, 7
    %vm91 = vcmask 1041409
    %v92 = vsel %vm91, %v90, %v86
    %v94 = vmul.f32 %v85, %v92
    %vm95 = vcmask 254976
    %v96 = vsel %vm95, %v94, 0.0
    %97 = vadd.xlane.f32.xlu0 %v96
    %v98 = vpop.xlane.xlu0 %97
    %v99 = vld [vmem:[#allocation5 + $0x1] sm:$0x1]
    %v100 = vld [vmem:[#allocation5 + $0x9] sm:$0x1]
    %v103 = vrot.slane %v100, 7
    %v104 = vsel %vm91, %v103, %v99
    %v106 = vmul.f32 %v85, %v104
    %v107 = vsel %vm95, %v106, 0.0
    %108 = vadd.xlane.f32.xlu0 %v107
    %v109 = vpop.xlane.xlu0 %108
    %v110 = vld [vmem:[#allocation5 + $0x2] sm:$0x1]
    %v111 = vld [vmem:[#allocation5 + $0xa] sm:$0x1]
    %v114 = vrot.slane %v111, 7
    %v115 = vsel %vm91, %v114, %v110
    %v117 = vmul.f32 %v85, %v115
    %v118 = vsel %vm95, %v117, 0.0
    %119 = vadd.xlane.f32.xlu0 %v118
    %v120 = vpop.xlane.xlu0 %119
    %v121 = vld [vmem:[#allocation5 + $0x3] sm:$0x1]
    %v122 = vld [vmem:[#allocation5 + $0xb] sm:$0x1]
    %v125 = vrot.slane %v122, 7
    %v126 = vsel %vm91, %v125, %v121
    %v128 = vmul.f32 %v85, %v126
    %v129 = vsel %vm95, %v128, 0.0
    %130 = vadd.xlane.f32.xlu0 %v129
    %v131 = vpop.xlane.xlu0 %130
    %v132 = vld [vmem:[#allocation5 + $0x4] sm:$0x1]
    %v133 = vld [vmem:[#allocation5 + $0xc] sm:$0x1]
    %v136 = vrot.slane %v133, 7
    %v137 = vsel %vm91, %v136, %v132
    %v139 = vmul.f32 %v85, %v137
    %v140 = vsel %vm95, %v139, 0.0
    %141 = vadd.xlane.f32.xlu0 %v140
    %v142 = vpop.xlane.xlu0 %141
    %v143 = vld [vmem:[#allocation5 + $0x5] sm:$0x1]
    %v144 = vld [vmem:[#allocation5 + $0xd] sm:$0x1]
    %v147 = vrot.slane %v144, 7
    %v148 = vsel %vm91, %v147, %v143
    %v150 = vmul.f32 %v85, %v148
    %v151 = vsel %vm95, %v150, 0.0
    %152 = vadd.xlane.f32.xlu0 %v151
    %v153 = vpop.xlane.xlu0 %152
    %v154 = vld [vmem:[#allocation5 + $0x6] sm:$0x1]
    %v155 = vld [vmem:[#allocation5 + $0xe] sm:$0x1]
    %v158 = vrot.slane %v155, 7
    %v159 = vsel %vm91, %v158, %v154
    %v161 = vmul.f32 %v85, %v159
    %v162 = vsel %vm95, %v161, 0.0
    %163 = vadd.xlane.f32.xlu0 %v162
    %v164 = vpop.xlane.xlu0 %163
    %v165 = vld [vmem:[#allocation5 + $0x7] sm:$0x1]
    %v166 = vld [vmem:[#allocation5 + $0xf] sm:$0x1]
    %v169 = vrot.slane %v166, 7
    %v170 = vsel %vm91, %v169, %v165
    %v172 = vmul.f32 %v85, %v170
    %v173 = vsel %vm95, %v172, 0.0
    %174 = vadd.xlane.f32.xlu0 %v173
    %v175 = vpop.xlane.xlu0 %174
    %vm176 = vcmask 7168
    %v177 = vsel %vm176, %v98, %v109
    %vm178 = vcmask 15360
    %v179 = vsel %vm178, %v177, %v120
    %vm180 = vcmask 23552
    %v181 = vsel %vm180, %v179, %v131
    %vm182 = vcmask 31744
    %v183 = vsel %vm182, %v181, %v142
    %vm184 = vcmask 39936
    %v185 = vsel %vm184, %v183, %v153
    %vm186 = vcmask 48128
    %v187 = vsel %vm186, %v185, %v164
    %vm188 = vcmask 56320
    %v189 = vsel %vm188, %v187, %v175
    %vm190 = vcmask 58368
    %v191 = vsel %vm190, %v189, -inf
    %192 = vmax.xlane.f32.xlu0 %v191
    %v193 = vpop.xlane.xlu0 %192
    %v194 = vsub.f32 %v189, %v193
    %v195 = vmul.f32 %v194, 1.442695
    %v196 = vpow.pop %v195
    %v197 = vsel %vm190, %v196, 0.0
    %198 = vadd.xlane.f32.xlu0 %v197
    %v199 = vpop.xlane.xlu0 %198
    %v200 = vrcp.pop %v199
    %v201 = vmul.f32 %v199, %v200
    %v202 = vsub.f32 1.0, %v201
    %v203 = vmul.f32 %v200, %v202
    %v204 = vadd.f32 %v200, %v203
    %vm205 = vweird.f32 %v199
    %vm206 = vweird.f32 %v200
    %vm207 = vmor %vm205, %vm206
    %v208 = vsel %vm207, %v200, %v204
    %v209 = vand.u32 2147483647, %v199
    %vm210 = vcmp.eq.f32.partialorder %v209, 8.507059e+37
    %v211 = vand.u32 %v199, 2147483648
    %v212 = vor.u32 1.1754944e-38, %v211
    %v213 = vsel %vm210, %v212, %v208
    %v214 = vmul.f32 %v196, %v213
    %216 = vset.pattern.permute.xlu0 0
    %217 = vperm.xlu0 %216, %v214
    %v218 = vpop.permute.xlu0 %217
    %v220 = vmul.f32 %v218, %v92
    %v221 = vadd.f32 %v220, 0.0
    %222 = vset.pattern.permute.xlu0 1
    %223 = vperm.xlu0 %222, %v214
    %v224 = vpop.permute.xlu0 %223
    %v226 = vmul.f32 %v224, %v104
    %v227 = vadd.f32 %v221, %v226
    %228 = vset.pattern.permute.xlu0 2
    %229 = vperm.xlu0 %228, %v214
    %v230 = vpop.permute.xlu0 %229
    %v232 = vmul.f32 %v230, %v115
    %v233 = vadd.f32 %v227, %v232
    %234 = vset.pattern.permute.xlu0 3
    %235 = vperm.xlu0 %234, %v214
    %v236 = vpop.permute.xlu0 %235
    %v238 = vmul.f32 %v236, %v126
    %v239 = vadd.f32 %v233, %v238
    %240 = vset.pattern.permute.xlu0 4
    %241 = vperm.xlu0 %240, %v214
    %v242 = vpop.permute.xlu0 %241
    %v244 = vmul.f32 %v242, %v137
    %v245 = vadd.f32 %v239, %v244
    %246 = vset.pattern.permute.xlu0 5
    %247 = vperm.xlu0 %246, %v214
    %v248 = vpop.permute.xlu0 %247
    %v250 = vmul.f32 %v248, %v148
    %v251 = vadd.f32 %v245, %v250
    %252 = vset.pattern.permute.xlu0 6
    %253 = vperm.xlu0 %252, %v214
    %v254 = vpop.permute.xlu0 %253
    %v256 = vmul.f32 %v254, %v159
    %v257 = vadd.f32 %v251, %v256
    %258 = vset.pattern.permute.xlu0 7
    %259 = vperm.xlu0 %258, %v214
    %v260 = vpop.permute.xlu0 %259
    %v262 = vmul.f32 %v260, %v170
    %v263 = vadd.f32 %v257, %v262
    %v264 = vld [vmem:[#allocation7] sm:$0xff]
    %v265 = vld [vmem:[#allocation7 + $0x8] sm:$0xff]
    %v266 = vld [vmem:[#allocation7 + $0x10] sm:$0xff]
    %v267 = vld [vmem:[#allocation7 + $0x18] sm:$0xff]
    %v268 = vld [vmem:[#allocation8] sm:$0xff]
    %v269 = vld [vmem:[#allocation8 + $0x8] sm:$0xff]
    %v270 = vld [vmem:[#allocation8 + $0x10] sm:$0xff]
    %v271 = vld [vmem:[#allocation8 + $0x18] sm:$0xff]
    %vm272 = vcmask 261120
    %v274 = vsel %vm272, %v85, 0
    %276 = vmatpush.msra.mxu0 0.0
    %277 = vmatpush.msra.mxu0 0.0
    %278 = vmatpush.msra.mxu0 0.0
    %279 = vmatpush.msra.mxu0 0.0
    %280 = vmatpush.msra.mxu0 0.0
    %281 = vmatpush.msra.mxu0 0.0
    %282 = vmatpush.msra.mxu0 0.0
    %283 = vmatpush.msra.mxu0 0.0
    %284 = vmatpush.msra.mxu0 0.0
    %285 = vmatpush.msra.mxu0 0.0
    %286 = vmatpush.msra.mxu0 0.0
    %287 = vmatpush.msra.mxu0 0.0
    %288 = vmatpush.msra.mxu0 %v271
    %289 = vmatpush.msra.mxu0 %v270
    %290 = vmatpush.msra.mxu0 %v269
    %291 = vmatpush.msra.mxu0 %v268
    %292 = vmatmul.f32.gmra.mxu0 %v274
    %v293 = vpop.f32.mrf.mxu0
    %v294 = vadd.f32 0.0, %v293
    %295 = vdwg.mxu0
    %v297 = vsel %vm272, %v263, 0
    %299 = vmatpush.msra.mxu0 0.0
    %300 = vmatpush.msra.mxu0 0.0
    %301 = vmatpush.msra.mxu0 0.0
    %302 = vmatpush.msra.mxu0 0.0
    %303 = vmatpush.msra.mxu0 0.0
    %304 = vmatpush.msra.mxu0 0.0
    %305 = vmatpush.msra.mxu0 0.0
    %306 = vmatpush.msra.mxu0 0.0
    %307 = vmatpush.msra.mxu0 0.0
    %308 = vmatpush.msra.mxu0 0.0
    %309 = vmatpush.msra.mxu0 0.0
    %310 = vmatpush.msra.mxu0 0.0
    %311 = vmatpush.msra.mxu0 %v267
    %312 = vmatpush.msra.mxu0 %v266
    %313 = vmatpush.msra.mxu0 %v265
    %314 = vmatpush.msra.mxu0 %v264
    %315 = vmatmul.f32.gmra.mxu0 %v297
    %v316 = vpop.f32.mrf.mxu0
    %v317 = vadd.f32 %v294, %v316
    %318 = vdwg.mxu0
    %v319 = vld [vmem:[%s4] sm:$0x1]
    %v321 = vperm.slane %v319, 0
    %v323 = vadd.f32 %v317, %v321
    %v324 = vtanh.pop %v323
    %325 = vst.msk [vmem:[#allocation10] sm:$0x3] %vm95, %v324
    %326 = vst.msk [vmem:[#allocation11] sm:$0x3] %vm190, %v214
    // Predicated region
    $region38: #{tpu_custom_call.1} parent=1 // pred_check
      _
    $region39: #{tpu_custom_call.1} parent=1 // pred_check_branch
      %328 = sbr.rel (0) target = $region41
    $region40: #{tpu_custom_call.1} parent=1 // pred_region
      %330 = vsyncadd [#allocation4], 0
      %s332 = sshll.u32 [#allocation10], 4
      %s333 = int_to_ptr.vmem [resolvable:$true] %s332
      %s334 = sshll.u32 %s5, 4
      %s335 = int_to_ptr.hbm [resolvable:$true] %s334
      %337 = dma.vmem_to_hbm [thread:$0]  %s333, 32, %s335, [#allocation4]
    $region41: #{tpu_custom_call.1} parent=1 // pred_fallthru
      _
    // Predicated region
    $region42: #{tpu_custom_call.1} parent=1 // pred_check
      _
    $region43: #{tpu_custom_call.1} parent=1 // pred_check_branch
      %339 = sbr.rel (0) target = $region45
    $region44: #{tpu_custom_call.1} parent=1 // pred_region
      %341 = vsyncadd [#allocation12], 0
      %s343 = sshll.u32 [#allocation11], 4
      %s344 = int_to_ptr.vmem [resolvable:$true] %s343
      %s345 = sshll.u32 %s6, 4
      %s346 = int_to_ptr.hbm [resolvable:$true] %s345
      %348 = dma.vmem_to_hbm [thread:$0]  %s344, 32, %s346, [#allocation12]
    $region45: #{tpu_custom_call.1} parent=1 // pred_fallthru
      _
    // Predicated region
    $region46: #{tpu_custom_call.1} parent=1 // pred_check
      _
    $region47: #{tpu_custom_call.1} parent=1 // pred_check_branch
      %350 = sbr.rel (0) target = $region49
    $region48: #{tpu_custom_call.1} parent=1 // pred_region
      %352 = dma.done [#allocation4], 32
    $region49: #{tpu_custom_call.1} parent=1 // pred_fallthru
      _
    // Predicated region
    $region50: #{tpu_custom_call.1} parent=1 // pred_check
      _
    $region51: #{tpu_custom_call.1} parent=1 // pred_check_branch
      %354 = sbr.rel (0) target = $region53
    $region52: #{tpu_custom_call.1} parent=1 // pred_region
      %356 = dma.done [#allocation12], 32
    $region53: #{tpu_custom_call.1} parent=1 // pred_fallthru
      _
    %357 = vsyncpa [#allocation3], 1
    %358 = vsyncpa [#allocation6], 1
    %359 = vsyncpa [#allocation9], 1
    %360 = vsyncpa [#allocation4], 1
    %361 = vsyncpa [#allocation12], 1

</llo_original>
